<compile_context>
chip_gen: v7x
topology: tpu7x:2x2x1
jax: 0.10.0
libtpu: 0.0.40
codegen_flags: <defaults>
</compile_context>

<pallas_src>
import jax
import jax.numpy as jnp
from jax.experimental import pallas as pl
from jax.experimental.pallas import tpu as pltpu

HIDDEN_DIM = 128


def _round_up(x, m):
    return ((x + m - 1) // m) * m


def classifier_kernel(x_ref, w1_ref, b1_ref, w2_ref, b2_ref, w3_ref, b3_ref, o_ref):
    x = x_ref[...]                                                       # (bm, D)
    # fc1 + ReLU (f32 accumulation on the MXU)
    h1 = jnp.dot(x, w1_ref[...], preferred_element_type=jnp.float32)    # (bm, H)
    h1 = jnp.maximum(h1 + b1_ref[...], 0.0)
    # fc2 + ReLU (cast activations to the weight dtype so a bf16 weight path stays on the MXU)
    h2 = jnp.dot(h1.astype(w2_ref.dtype), w2_ref[...],
                 preferred_element_type=jnp.float32)                     # (bm, H)
    h2 = jnp.maximum(h2 + b2_ref[...], 0.0)
    # Output head: (1,H) . (bm,H)^T -> (1, bm).  Computing it transposed puts the batch on the
    # lane axis, so the single output column is stored lane-dense (unmasked vst, contiguous DMA).
    z = jnp.einsum('oh,bh->ob', w3_ref[...], h2.astype(w3_ref.dtype),
                   preferred_element_type=jnp.float32)                   # (1, bm)
    z = z + b3_ref[...]
    # Sigmoid via EUP exp + approximate EUP reciprocal (keeps the divide off the VALU).
    o_ref[...] = pl.reciprocal(1.0 + jnp.exp(-z), approx=True).astype(o_ref.dtype)


def _auto_block_rows(B, D, itemsize):
    """Batch tile heuristic: >=2 grid steps when possible (v7x megacore split), <=2048 rows
    (amortizes per-step overhead on single-TC v5e/v6e), and small enough that the
    double-buffered x tile stays ~<=12 MiB (safe under v5e's 16 MiB scoped-VMEM default)."""
    vmem_budget = 12 * 1024 * 1024
    cap = max(128, (vmem_budget // (2 * D * itemsize)) // 128 * 128)
    return int(min(2048, cap, max(256, _round_up(pl.cdiv(B, 2), 128))))


def classifier_forward(x, w1, b1, w2, b2, w3, b3, *, bm=None, core_parallel=False,
                       vmem_limit_bytes=None):
    """x: (B, D).  w1: (D,H), w2: (H,H) in (in,out) layout; w3: (1,H) PyTorch (out,in) row;
    b1, b2: (1,H); b3: (1,1).  Returns sigmoid output of shape (B, 1), float32."""
    B, D = x.shape
    H = w1.shape[1]

    if bm is None:
        bm = _auto_block_rows(B, D, x.dtype.itemsize)
    if B <= bm:
        bm_eff = B                      # single block == whole array: no padding, no ragged DMA
    else:
        bm_eff = _round_up(bm, 128)     # aligned tiles; final block may be ragged (masked DMA)

    num_tiles = int(pl.cdiv(B, bm_eff))

    # On v7x pass core_parallel=True to shard the batch grid across both TensorCores.
    semantics = (pltpu.CORE_PARALLEL,) if core_parallel else ("parallel",)

    out_row = pl.pallas_call(
        classifier_kernel,
        out_shape=jax.ShapeDtypeStruct((1, num_tiles * bm_eff), jnp.float32),
        grid_spec=pltpu.PrefetchScalarGridSpec(
            num_scalar_prefetch=0,
            grid=(num_tiles,),
            in_specs=[
                pl.BlockSpec((bm_eff, D), lambda i: (i, 0)),   # x tile (only per-step DMA)
                pl.BlockSpec((D, H), lambda i: (0, 0)),        # w1: resident across the grid
                pl.BlockSpec((1, H), lambda i: (0, 0)),        # b1
                pl.BlockSpec((H, H), lambda i: (0, 0)),        # w2
                pl.BlockSpec((1, H), lambda i: (0, 0)),        # b2
                pl.BlockSpec((1, H), lambda i: (0, 0)),        # w3 row ((out,in) layout)
                pl.BlockSpec((1, 1), lambda i: (0, 0)),        # b3
            ],
            # Lane-major batch row: each grid step fills its own 128-aligned lane range.
            out_specs=pl.BlockSpec((1, bm_eff), lambda i: (0, i)),
        ),
        compiler_params=pltpu.CompilerParams(
            dimension_semantics=semantics,
            vmem_limit_bytes=vmem_limit_bytes,
        ),
    )(x, w1, b1, w2, b2, w3, b3)

    # Drop the tail of the last (possibly ragged) block and restore the (B, 1) column shape.
    return out_row[0, :B].reshape(B, 1)


def init_params(key, encoder_state_dim, hidden_dim=HIDDEN_DIM, output_dim=1):
    k1, k2, k3, k4, k5, k6 = jax.random.split(key, 6)

    def lin(kw, kb, fan_in, w_shape, b_shape):
        bound = 1.0 / jnp.sqrt(fan_in)
        w = jax.random.uniform(kw, w_shape, jnp.float32, -bound, bound)
        b = jax.random.uniform(kb, b_shape, jnp.float32, -bound, bound)
        return w, b

    w1, b1 = lin(k1, k2, encoder_state_dim,
                 (encoder_state_dim, hidden_dim), (1, hidden_dim))
    w2, b2 = lin(k3, k4, hidden_dim,
                 (hidden_dim, hidden_dim), (1, hidden_dim))
    # w3 kept in PyTorch (out, in) row form = (1, H); b3 is (1, 1).
    w3, b3 = lin(k5, k6, hidden_dim,
                 (output_dim, hidden_dim), (1, output_dim))
    return w1, b1, w2, b2, w3, b3


def reference_forward(x, w1, b1, w2, b2, w3, b3):
    h1 = jax.nn.relu(x @ w1 + b1)
    h2 = jax.nn.relu(h1 @ w2 + b2)
    return jax.nn.sigmoid(h2 @ w3.T + b3)


if __name__ == "__main__":
    key = jax.random.PRNGKey(0)
    kx, kp, kx2 = jax.random.split(key, 3)

    encoder_state_dim = 32
    params = init_params(kp, encoder_state_dim)

    # Small batch: single tile covering the whole batch (no padding, no ragged block).
    B = 16
    x = jax.random.normal(kx, (B, encoder_state_dim), dtype=jnp.float32)
    out = jax.block_until_ready(classifier_forward(x, *params))
    ref = reference_forward(x, *params)
    assert out.shape == (B, 1)
    # Tolerance accounts for the approximate EUP reciprocal in the sigmoid (~1e-3 rel error).
    assert jnp.allclose(out, ref, atol=1e-2, rtol=1e-2), float(jnp.max(jnp.abs(out - ref)))

    # Multi-tile + ragged final block path (grid = cdiv(B, bm), last tile masked, tail sliced).
    B2 = 300
    x2 = jax.random.normal(kx2, (B2, encoder_state_dim), dtype=jnp.float32)
    out2 = jax.block_until_ready(classifier_forward(x2, *params, bm=128))
    ref2 = reference_forward(x2, *params)
    assert out2.shape == (B2, 1)
    assert jnp.allclose(out2, ref2, atol=1e-2, rtol=1e-2), float(jnp.max(jnp.abs(out2 - ref2)))

    print("KERNEL_OK")
</pallas_src>

<mosaic_0001>
module attributes {stable_mosaic.version = 11 : i64} {
  func.func @classifier_kernel(%arg0: i32, %arg1: memref<16x32xf32, #tpu.memory_space<vmem>>, %arg2: memref<32x128xf32, #tpu.memory_space<vmem>>, %arg3: memref<1x128xf32, #tpu.memory_space<vmem>>, %arg4: memref<128x128xf32, #tpu.memory_space<vmem>>, %arg5: memref<1x128xf32, #tpu.memory_space<vmem>>, %arg6: memref<1x128xf32, #tpu.memory_space<vmem>>, %arg7: memref<1x1xf32, #tpu.memory_space<vmem>>, %arg8: memref<1x16xf32, #tpu.memory_space<vmem>>) attributes {dimension_semantics = [#tpu.dimension_semantics<parallel>], iteration_bounds = array<i64: 1>, scalar_prefetch = 0 : i64, scratch_operands = 0 : i64, tpu.core_type = #tpu.core_type<tc>, window_params = [{transform_indices = @transform_0, window_bounds = array<i64: 16, 32>}, {pipeline_mode = #tpu.pipeline_mode<synchronous>, transform_indices = @transform_1, window_bounds = array<i64: 32, 128>}, {pipeline_mode = #tpu.pipeline_mode<synchronous>, transform_indices = @transform_2, window_bounds = array<i64: 1, 128>}, {pipeline_mode = #tpu.pipeline_mode<synchronous>, transform_indices = @transform_3, window_bounds = array<i64: 128, 128>}, {pipeline_mode = #tpu.pipeline_mode<synchronous>, transform_indices = @transform_4, window_bounds = array<i64: 1, 128>}, {pipeline_mode = #tpu.pipeline_mode<synchronous>, transform_indices = @transform_5, window_bounds = array<i64: 1, 128>}, {pipeline_mode = #tpu.pipeline_mode<synchronous>, transform_indices = @transform_6, window_bounds = array<i64: 1, 1>}, {transform_indices = @transform_7, window_bounds = array<i64: 1, 16>}]} {
    %c0 = arith.constant 0 : index
    %c0_0 = arith.constant 0 : index
    %0 = vector.load %arg1[%c0, %c0_0] : memref<16x32xf32, #tpu.memory_space<vmem>>, vector<16x32xf32>
    %c0_1 = arith.constant 0 : index
    %c0_2 = arith.constant 0 : index
    %1 = vector.load %arg2[%c0_1, %c0_2] : memref<32x128xf32, #tpu.memory_space<vmem>>, vector<32x128xf32>
    %cst = arith.constant dense<0.000000e+00> : vector<16x128xf32>
    %2 = tpu.matmul %0, %1, %cst {dimension_numbers = #tpu.dot_dimension_numbers<[1], [0], [0], [1], [0, 0, 1, 1], [], []>} : vector<16x32xf32>, vector<32x128xf32>, vector<16x128xf32> -> vector<16x128xf32>
    %c0_3 = arith.constant 0 : index
    %c0_4 = arith.constant 0 : index
    %3 = vector.load %arg3[%c0_3, %c0_4] : memref<1x128xf32, #tpu.memory_space<vmem>>, vector<1x128xf32>
    %4 = vector.broadcast %3 : vector<1x128xf32> to vector<16x128xf32>
    %5 = arith.addf %2, %4 : vector<16x128xf32>
    %cst_5 = arith.constant 0.000000e+00 : f32
    %6 = vector.broadcast %cst_5 : f32 to vector<16x128xf32>
    %7 = arith.maximumf %5, %6 : vector<16x128xf32>
    %c0_6 = arith.constant 0 : index
    %c0_7 = arith.constant 0 : index
    %8 = vector.load %arg4[%c0_6, %c0_7] : memref<128x128xf32, #tpu.memory_space<vmem>>, vector<128x128xf32>
    %cst_8 = arith.constant dense<0.000000e+00> : vector<16x128xf32>
    %9 = tpu.matmul %7, %8, %cst_8 {dimension_numbers = #tpu.dot_dimension_numbers<[1], [0], [0], [1], [0, 0, 1, 1], [], []>} : vector<16x128xf32>, vector<128x128xf32>, vector<16x128xf32> -> vector<16x128xf32>
    %c0_9 = arith.constant 0 : index
    %c0_10 = arith.constant 0 : index
    %10 = vector.load %arg5[%c0_9, %c0_10] : memref<1x128xf32, #tpu.memory_space<vmem>>, vector<1x128xf32>
    %11 = vector.broadcast %10 : vector<1x128xf32> to vector<16x128xf32>
    %12 = arith.addf %9, %11 : vector<16x128xf32>
    %cst_11 = arith.constant 0.000000e+00 : f32
    %13 = vector.broadcast %cst_11 : f32 to vector<16x128xf32>
    %14 = arith.maximumf %12, %13 : vector<16x128xf32>
    %c0_12 = arith.constant 0 : index
    %c0_13 = arith.constant 0 : index
    %15 = vector.load %arg6[%c0_12, %c0_13] : memref<1x128xf32, #tpu.memory_space<vmem>>, vector<1x128xf32>
    "tpu.trace_start"() <{level = 10 : i32, message = "oh,bh->ob"}> : () -> ()
    %cst_14 = arith.constant dense<0.000000e+00> : vector<1x16xf32>
    %16 = tpu.matmul %15, %14, %cst_14 {dimension_numbers = #tpu.dot_dimension_numbers<[1], [1], [0], [0], [0, 0, 1, 0], [], []>} : vector<1x128xf32>, vector<16x128xf32>, vector<1x16xf32> -> vector<1x16xf32>
    "tpu.trace_stop"() : () -> ()
    %c0_15 = arith.constant 0 : index
    %c0_16 = arith.constant 0 : index
    %17 = vector.load %arg7[%c0_15, %c0_16] : memref<1x1xf32, #tpu.memory_space<vmem>>, vector<1x1xf32>
    %18 = vector.broadcast %17 : vector<1x1xf32> to vector<1x16xf32>
    %19 = arith.addf %16, %18 : vector<1x16xf32>
    %cst_17 = arith.constant 0.000000e+00 : f32
    %20 = vector.broadcast %cst_17 : f32 to vector<1x16xf32>
    %21 = arith.subf %20, %19 : vector<1x16xf32>
    %22 = math.exp %21 : vector<1x16xf32>
    %cst_18 = arith.constant 1.000000e+00 : f32
    %23 = vector.broadcast %cst_18 : f32 to vector<1x16xf32>
    %24 = arith.addf %23, %22 : vector<1x16xf32>
    %25 = tpu.reciprocal %24 {approx = true} : vector<1x16xf32> -> vector<1x16xf32>
    %c0_19 = arith.constant 0 : index
    %c0_20 = arith.constant 0 : index
    %26 = vector.load %arg8[%c0_19, %c0_20] : memref<1x16xf32, #tpu.memory_space<vmem>>, vector<1x16xf32>
    tpu.vector_store %arg8[%c0_19, %c0_20], %25 {strides = array<i32>} : memref<1x16xf32, #tpu.memory_space<vmem>>, vector<1x16xf32>,
    return
  }
  func.func @transform_0(%arg0: i32) -> (i32, i32) {
    %c0_i32 = arith.constant 0 : i32
    %c0_i32_0 = arith.constant 0 : i32
    return %arg0, %c0_i32 : i32, i32
  }
  func.func @transform_1(%arg0: i32) -> (i32, i32) {
    %c0_i32 = arith.constant 0 : i32
    %c0_i32_0 = arith.constant 0 : i32
    %c0_i32_1 = arith.constant 0 : i32
    return %c0_i32, %c0_i32_0 : i32, i32
  }
  func.func @transform_2(%arg0: i32) -> (i32, i32) {
    %c0_i32 = arith.constant 0 : i32
    %c0_i32_0 = arith.constant 0 : i32
    %c0_i32_1 = arith.constant 0 : i32
    return %c0_i32, %c0_i32_0 : i32, i32
  }
  func.func @transform_3(%arg0: i32) -> (i32, i32) {
    %c0_i32 = arith.constant 0 : i32
    %c0_i32_0 = arith.constant 0 : i32
    %c0_i32_1 = arith.constant 0 : i32
    return %c0_i32, %c0_i32_0 : i32, i32
  }
  func.func @transform_4(%arg0: i32) -> (i32, i32) {
    %c0_i32 = arith.constant 0 : i32
    %c0_i32_0 = arith.constant 0 : i32
    %c0_i32_1 = arith.constant 0 : i32
    return %c0_i32, %c0_i32_0 : i32, i32
  }
  func.func @transform_5(%arg0: i32) -> (i32, i32) {
    %c0_i32 = arith.constant 0 : i32
    %c0_i32_0 = arith.constant 0 : i32
    %c0_i32_1 = arith.constant 0 : i32
    return %c0_i32, %c0_i32_0 : i32, i32
  }
  func.func @transform_6(%arg0: i32) -> (i32, i32) {
    %c0_i32 = arith.constant 0 : i32
    %c0_i32_0 = arith.constant 0 : i32
    %c0_i32_1 = arith.constant 0 : i32
    return %c0_i32, %c0_i32_0 : i32, i32
  }
  func.func @transform_7(%arg0: i32) -> (i32, i32) {
    %c0_i32 = arith.constant 0 : i32
    %c0_i32_0 = arith.constant 0 : i32
    return %c0_i32, %arg0 : i32, i32
  }
}

</mosaic_0001>

<llo_original>
// kernel: tpu_custom_call.1
$region0: #{tpu_custom_call.1}
  #allocation0 [shape = 'u32[]', space=smem, size = 0x4, offset = 0x4, fixed_abs, tag = 'smem constant byte address 0x4 - core index']
  #allocation1 [shape = 'u32[144,128]{1,0:T(1,128)}', space=vmem, size = 0x12000, scoped, tag = 'internal scratch']
  #allocation2 [shape = 'f32[1,1]{1,0:T(1,128)S(1)}', space=vmem, size = 0x200, scoped, tag = 'scoped memory for tpu_custom_call.1']
  %s0 = inlined_call_operand.hbm [shape: f32[16,32], index: 0, kind: input, shape index: {}]
  %s1 = inlined_call_operand.hbm [shape: f32[32,128], index: 1, kind: input, shape index: {}]
  %s2 = inlined_call_operand.vmem [shape: f32[1,128], index: 2, kind: input, shape index: {}]
  %s3 = inlined_call_operand.hbm [shape: f32[128,128], index: 3, kind: input, shape index: {}]
  %s4 = inlined_call_operand.vmem [shape: f32[1,128], index: 4, kind: input, shape index: {}]
  %s5 = inlined_call_operand.vmem [shape: f32[1,128], index: 5, kind: input, shape index: {}]
  %s6 = inlined_call_operand.<no memory space> [shape: f32[1,1], index: 6, kind: input, shape index: {}]
  %s7 = inlined_call_operand.hbm [shape: f32[1,16], index: 7, kind: output, shape index: {}]
  %s8 = sld [smem:[#allocation0]]
  $region50: #{tpu_custom_call.1} parent=0
    _
  %s10 = ssub.s32 1, %s8
  %s11 = scalar_select 0, %s10, %s8
  %v12 = vstv %s6
  %13 = vst [vmem:[#allocation2] sm:$0x1] %v12
  $region1: #{tpu_custom_call.1} parent=0
    #allocation3 [shape = 'u8[8192]{0}', space=vmem, size = 0x2000, scoped, tag = 'input window, operand 0, single buffered']
    #allocation4 [shape = 's32[1]{0}', space=sflag, size = 0x4, scoped, tag = 'scoped memory for tpu_custom_call.1']
    #allocation5 [shape = 's32[1]{0}', space=sflag, size = 0x4, scoped, tag = 'scoped memory for tpu_custom_call.1']
    #allocation6 [shape = 'u8[16384]{0}', space=vmem, size = 0x4000, scoped, tag = 'input window, operand 1, single buffered']
    #allocation7 [shape = 's32[1]{0}', space=sflag, size = 0x4, scoped, tag = 'scoped memory for tpu_custom_call.1']
    #allocation8 [shape = 'u8[65536]{0}', space=vmem, size = 0x10000, scoped, tag = 'input window, operand 3, single buffered']
    #allocation9 [shape = 'u8[512]{0}', space=vmem, size = 0x400, scoped, tag = 'output window, operand 0, single buffered']
    %14 = vsyncpa [#allocation4], 0
    %15 = vsyncpa [#allocation7], 0
    %16 = vsyncpa [#allocation5], 0
    // Predicated region
    $region2: #{tpu_custom_call.1} parent=1 // pred_check
      _
    $region3: #{tpu_custom_call.1} parent=1 // pred_check_branch
      %18 = sbr.rel (0) target = $region5
    $region4: #{tpu_custom_call.1} parent=1 // pred_region
      %s20 = ssub.s32 256, 256
      %21 = vsyncadd [#allocation4], %s20
      %s22 = sshll.u32 [#allocation3], 4
      %s23 = int_to_ptr.vmem [resolvable:$true] %s22
      %28 = dma.hbm_to_vmem [thread:$0]  %s0, 256, %s23, [#allocation4], 128, 128, 8
    $region5: #{tpu_custom_call.1} parent=1 // pred_fallthru
      _
    // Predicated region
    $region6: #{tpu_custom_call.1} parent=1 // pred_check
      _
    $region7: #{tpu_custom_call.1} parent=1 // pred_check_branch
      %30 = sbr.rel (0) target = $region9
    $region8: #{tpu_custom_call.1} parent=1 // pred_region
      %s32 = ssub.s32 512, 512
      %33 = vsyncadd [#allocation7], %s32
      %s34 = sshll.u32 [#allocation6], 4
      %s35 = int_to_ptr.vmem [resolvable:$true] %s34
      %40 = dma.hbm_to_vmem [thread:$0]  %s1, 512, %s35, [#allocation7], 128, 128, 8
    $region9: #{tpu_custom_call.1} parent=1 // pred_fallthru
      _
    // Predicated region
    $region10: #{tpu_custom_call.1} parent=1 // pred_check
      _
    $region11: #{tpu_custom_call.1} parent=1 // pred_check_branch
      %42 = sbr.rel (0) target = $region13
    $region12: #{tpu_custom_call.1} parent=1 // pred_region
      _
    $region13: #{tpu_custom_call.1} parent=1 // pred_fallthru
      _
    // Predicated region
    $region14: #{tpu_custom_call.1} parent=1 // pred_check
      _
    $region15: #{tpu_custom_call.1} parent=1 // pred_check_branch
      %44 = sbr.rel (0) target = $region17
    $region16: #{tpu_custom_call.1} parent=1 // pred_region
      %s46 = ssub.s32 2048, 2048
      %47 = vsyncadd [#allocation7], %s46
      %s48 = sshll.u32 [#allocation8], 4
      %s49 = int_to_ptr.vmem [resolvable:$true] %s48
      %54 = dma.hbm_to_vmem [thread:$0]  %s3, 2048, %s49, [#allocation7], 128, 128, 8
    $region17: #{tpu_custom_call.1} parent=1 // pred_fallthru
      _
    // Predicated region
    $region18: #{tpu_custom_call.1} parent=1 // pred_check
      _
    $region19: #{tpu_custom_call.1} parent=1 // pred_check_branch
      %56 = sbr.rel (0) target = $region21
    $region20: #{tpu_custom_call.1} parent=1 // pred_region
      _
    $region21: #{tpu_custom_call.1} parent=1 // pred_fallthru
      _
    // Predicated region
    $region22: #{tpu_custom_call.1} parent=1 // pred_check
      _
    $region23: #{tpu_custom_call.1} parent=1 // pred_check_branch
      %58 = sbr.rel (0) target = $region25
    $region24: #{tpu_custom_call.1} parent=1 // pred_region
      _
    $region25: #{tpu_custom_call.1} parent=1 // pred_fallthru
      _
    // Predicated region
    $region26: #{tpu_custom_call.1} parent=1 // pred_check
      _
    $region27: #{tpu_custom_call.1} parent=1 // pred_check_branch
      %60 = sbr.rel (0) target = $region29
    $region28: #{tpu_custom_call.1} parent=1 // pred_region
      _
    $region29: #{tpu_custom_call.1} parent=1 // pred_fallthru
      _
    // Predicated region
    $region30: #{tpu_custom_call.1} parent=1 // pred_check
      _
    $region31: #{tpu_custom_call.1} parent=1 // pred_check_branch
      %62 = sbr.rel (0) target = $region33
    $region32: #{tpu_custom_call.1} parent=1 // pred_region
      %63 = dma.done [#allocation4], 256
    $region33: #{tpu_custom_call.1} parent=1 // pred_fallthru
      _
    // Predicated region
    $region34: #{tpu_custom_call.1} parent=1 // pred_check
      _
    $region35: #{tpu_custom_call.1} parent=1 // pred_check_branch
      %65 = sbr.rel (0) target = $region37
    $region36: #{tpu_custom_call.1} parent=1 // pred_region
      %66 = dma.done [#allocation7], 512
    $region37: #{tpu_custom_call.1} parent=1 // pred_fallthru
      _
    // Predicated region
    $region38: #{tpu_custom_call.1} parent=1 // pred_check
      _
    $region39: #{tpu_custom_call.1} parent=1 // pred_check_branch
      %68 = sbr.rel (0) target = $region41
    $region40: #{tpu_custom_call.1} parent=1 // pred_region
      %69 = dma.done [#allocation7], 2048
    $region41: #{tpu_custom_call.1} parent=1 // pred_fallthru
      _
    %v70 = vld [vmem:[#allocation3] sm:$0xff]
    %v71 = vld [vmem:[#allocation3 + $0x8] sm:$0xff]
    %v72 = vld [vmem:[#allocation6] sm:$0xff]
    %v73 = vld [vmem:[#allocation6 + $0x8] sm:$0xff]
    %v74 = vld [vmem:[#allocation6 + $0x10] sm:$0xff]
    %v75 = vld [vmem:[#allocation6 + $0x18] sm:$0xff]
    %v76 = vld [vmem:[%s2] sm:$0x1]
    %v78 = vlaneseq
    %v79 = vshrl.u32 %v78, 7
    %v80 = vsub.s32 0, %v79
    %v81 = vrot.slane %v76, %v80
    %vm83 = vcmask 261120
    %v85 = vsel %vm83, %v70, 0
    %v88 = vsel %vm83, %v71, 0
    %90 = vmatprep.subr.mxu0 0.0
    %91 = vmatpush1.msra.mxu0 %v72
    %92 = vmatprep.subr.mxu0 0.0
    %93 = vmatpush1.msra.mxu0 %v73
    %94 = vmatprep.subr.mxu0 0.0
    %95 = vmatpush1.msra.mxu0 %v74
    %96 = vmatprep.subr.mxu0 0.0
    %97 = vmatpush1.msra.mxu0 %v75
    %98 = vmatprep.subr.mxu0 0.0
    %99 = vmatpush1.msra.mxu0 0.0
    %100 = vmatprep.subr.mxu0 0.0
    %101 = vmatpush1.msra.mxu0 0.0
    %102 = vmatprep.subr.mxu0 0.0
    %103 = vmatpush1.msra.mxu0 0.0
    %104 = vmatprep.subr.mxu0 0.0
    %105 = vmatpush1.msra.mxu0 0.0
    %106 = vmatprep.subr.mxu0 0.0
    %107 = vmatpush1.msra.mxu0 0.0
    %108 = vmatprep.subr.mxu0 0.0
    %109 = vmatpush1.msra.mxu0 0.0
    %110 = vmatprep.subr.mxu0 0.0
    %111 = vmatpush1.msra.mxu0 0.0
    %112 = vmatprep.subr.mxu0 0.0
    %113 = vmatpush1.msra.mxu0 0.0
    %114 = vmatprep.subr.mxu0 0.0
    %115 = vmatpush1.msra.mxu0 0.0
    %116 = vmatprep.subr.mxu0 0.0
    %117 = vmatpush1.msra.mxu0 0.0
    %118 = vmatprep.subr.mxu0 0.0
    %119 = vmatpush1.msra.mxu0 0.0
    %120 = vmatprep.subr.mxu0 0.0
    %121 = vmatpush1.msra.mxu0 0.0
    %122 = vmatprep.subr.mxu0 0.0
    %123 = vmatpush1.msra.mxu0 0.0
    %124 = vmatprep.subr.mxu0 0.0
    %125 = vmatpush1.msra.mxu0 0.0
    %126 = vmatprep.subr.mxu0 0.0
    %127 = vmatpush1.msra.mxu0 0.0
    %128 = vmatprep.subr.mxu0 0.0
    %129 = vmatpush1.msra.mxu0 0.0
    %130 = vmatprep.subr.mxu0 0.0
    %131 = vmatpush1.msra.mxu0 0.0
    %132 = vmatprep.subr.mxu0 0.0
    %133 = vmatpush1.msra.mxu0 0.0
    %134 = vmatprep.subr.mxu0 0.0
    %135 = vmatpush1.msra.mxu0 0.0
    %136 = vmatprep.subr.mxu0 0.0
    %137 = vmatpush1.msra.mxu0 0.0
    %138 = vmatprep.subr.mxu0 0.0
    %139 = vmatpush1.msra.mxu0 0.0
    %140 = vmatprep.subr.mxu0 0.0
    %141 = vmatpush1.msra.mxu0 0.0
    %142 = vmatprep.subr.mxu0 0.0
    %143 = vmatpush1.msra.mxu0 0.0
    %144 = vmatprep.subr.mxu0 0.0
    %145 = vmatpush1.msra.mxu0 0.0
    %146 = vmatprep.subr.mxu0 0.0
    %147 = vmatpush1.msra.mxu0 0.0
    %148 = vmatprep.subr.mxu0 0.0
    %149 = vmatpush1.msra.mxu0 0.0
    %150 = vmatprep.subr.mxu0 0.0
    %151 = vmatpush1.msra.mxu0 0.0
    %152 = vmatprep.subr.mxu0 0.0
    %153 = vmatpush1.msra.mxu0 0.0
    %154 = vmatprep.mubr.f32.mxu0 0.0
    %155 = vmatmul.mubr.f32.gmra.mrb[0].mxu0 %v85
    %v156 = vpop.f32.mrb[0].mxu0
    %v157 = vadd.f32 %v81, %v156
    %v158 = vpop.f32.mrb[0].mxu0
    %159 = vmatprep.mubr.f32.mxu0 0.0
    %160 = vmatmul.mubr.f32.gmra.mrb[0].mxu0 %v88
    %v161 = vpop.f32.mrb[0].mxu0
    %v162 = vadd.f32 %v81, %v161
    %v163 = vpop.f32.mrb[0].mxu0
    %164 = vdwg.mxu0
    %v165 = vmax.f32 %v157, 0.0
    %v166 = vmax.f32 %v162, 0.0
    %v167 = vld [vmem:[#allocation8] sm:$0xff]
    %v168 = vld [vmem:[#allocation8 + $0x8] sm:$0xff]
    %v169 = vld [vmem:[#allocation8 + $0x10] sm:$0xff]
    %v170 = vld [vmem:[#allocation8 + $0x18] sm:$0xff]
    %v171 = vld [vmem:[#allocation8 + $0x20] sm:$0xff]
    %v172 = vld [vmem:[#allocation8 + $0x28] sm:$0xff]
    %v173 = vld [vmem:[#allocation8 + $0x30] sm:$0xff]
    %v174 = vld [vmem:[#allocation8 + $0x38] sm:$0xff]
    %v175 = vld [vmem:[#allocation8 + $0x40] sm:$0xff]
    %v176 = vld [vmem:[#allocation8 + $0x48] sm:$0xff]
    %v177 = vld [vmem:[#allocation8 + $0x50] sm:$0xff]
    %v178 = vld [vmem:[#allocation8 + $0x58] sm:$0xff]
    %v179 = vld [vmem:[#allocation8 + $0x60] sm:$0xff]
    %v180 = vld [vmem:[#allocation8 + $0x68] sm:$0xff]
    %v181 = vld [vmem:[#allocation8 + $0x70] sm:$0xff]
    %v182 = vld [vmem:[#allocation8 + $0x78] sm:$0xff]
    %v183 = vld [vmem:[%s4] sm:$0x1]
    %v185 = vlaneseq
    %v186 = vshrl.u32 %v185, 7
    %v187 = vsub.s32 0, %v186
    %v188 = vrot.slane %v183, %v187
    %190 = vmatprep.subr.mxu0 0.0
    %191 = vmatpush1.msra.mxu0 %v167
    %192 = vmatprep.subr.mxu0 0.0
    %193 = vmatpush1.msra.mxu0 %v168
    %194 = vmatprep.subr.mxu0 0.0
    %195 = vmatpush1.msra.mxu0 %v169
    %196 = vmatprep.subr.mxu0 0.0
    %197 = vmatpush1.msra.mxu0 %v170
    %198 = vmatprep.subr.mxu0 0.0
    %199 = vmatpush1.msra.mxu0 %v171
    %200 = vmatprep.subr.mxu0 0.0
    %201 = vmatpush1.msra.mxu0 %v172
    %202 = vmatprep.subr.mxu0 0.0
    %203 = vmatpush1.msra.mxu0 %v173
    %204 = vmatprep.subr.mxu0 0.0
    %205 = vmatpush1.msra.mxu0 %v174
    %206 = vmatprep.subr.mxu0 0.0
    %207 = vmatpush1.msra.mxu0 %v175
    %208 = vmatprep.subr.mxu0 0.0
    %209 = vmatpush1.msra.mxu0 %v176
    %210 = vmatprep.subr.mxu0 0.0
    %211 = vmatpush1.msra.mxu0 %v177
    %212 = vmatprep.subr.mxu0 0.0
    %213 = vmatpush1.msra.mxu0 %v178
    %214 = vmatprep.subr.mxu0 0.0
    %215 = vmatpush1.msra.mxu0 %v179
    %216 = vmatprep.subr.mxu0 0.0
    %217 = vmatpush1.msra.mxu0 %v180
    %218 = vmatprep.subr.mxu0 0.0
    %219 = vmatpush1.msra.mxu0 %v181
    %220 = vmatprep.subr.mxu0 0.0
    %221 = vmatpush1.msra.mxu0 %v182
    %222 = vmatprep.subr.mxu0 0.0
    %223 = vmatpush1.msra.mxu0 0.0
    %224 = vmatprep.subr.mxu0 0.0
    %225 = vmatpush1.msra.mxu0 0.0
    %226 = vmatprep.subr.mxu0 0.0
    %227 = vmatpush1.msra.mxu0 0.0
    %228 = vmatprep.subr.mxu0 0.0
    %229 = vmatpush1.msra.mxu0 0.0
    %230 = vmatprep.subr.mxu0 0.0
    %231 = vmatpush1.msra.mxu0 0.0
    %232 = vmatprep.subr.mxu0 0.0
    %233 = vmatpush1.msra.mxu0 0.0
    %234 = vmatprep.subr.mxu0 0.0
    %235 = vmatpush1.msra.mxu0 0.0
    %236 = vmatprep.subr.mxu0 0.0
    %237 = vmatpush1.msra.mxu0 0.0
    %238 = vmatprep.subr.mxu0 0.0
    %239 = vmatpush1.msra.mxu0 0.0
    %240 = vmatprep.subr.mxu0 0.0
    %241 = vmatpush1.msra.mxu0 0.0
    %242 = vmatprep.subr.mxu0 0.0
    %243 = vmatpush1.msra.mxu0 0.0
    %244 = vmatprep.subr.mxu0 0.0
    %245 = vmatpush1.msra.mxu0 0.0
    %246 = vmatprep.subr.mxu0 0.0
    %247 = vmatpush1.msra.mxu0 0.0
    %248 = vmatprep.subr.mxu0 0.0
    %249 = vmatpush1.msra.mxu0 0.0
    %250 = vmatprep.subr.mxu0 0.0
    %251 = vmatpush1.msra.mxu0 0.0
    %252 = vmatprep.subr.mxu0 0.0
    %253 = vmatpush1.msra.mxu0 0.0
    %254 = vmatprep.mubr.f32.mxu0 0.0
    %255 = vmatmul.mubr.f32.gmra.mrb[0].mxu0 %v165
    %v256 = vpop.f32.mrb[0].mxu0
    %v257 = vadd.f32 %v188, %v256
    %v258 = vpop.f32.mrb[0].mxu0
    %259 = vmatprep.mubr.f32.mxu0 0.0
    %260 = vmatmul.mubr.f32.gmra.mrb[0].mxu0 %v166
    %v261 = vpop.f32.mrb[0].mxu0
    %v262 = vadd.f32 %v188, %v261
    %v263 = vpop.f32.mrb[0].mxu0
    %264 = vdwg.mxu0
    %v265 = vmax.f32 %v257, 0.0
    %v266 = vmax.f32 %v262, 0.0
    %v267 = vld [vmem:[%s5] sm:$0x1]
    %v268 = vld [vmem:[#allocation2] sm:$0x1]
    %270 = vset.pattern.permute.xlu0 0
    %271 = vperm.xlu0 %270, %v268
    %v272 = vpop.permute.xlu0 %271
    %v274 = vlaneseq
    %v275 = vshrl.u32 %v274, 7
    %v276 = vsub.s32 0, %v275
    %v277 = vrot.slane %v272, %v276
    %278 = vmatprep.subr.mxu0 0.0
    %279 = vmatpush1.xpose.msra.mxu0 %v265
    %280 = vmatprep.subr.mxu0 0.0
    %281 = vmatpush1.xpose.msra.mxu0 %v266
    %282 = vmatprep.subr.mxu0 0.0
    %283 = vmatpush1.xpose.msra.mxu0 0.0
    %284 = vmatprep.subr.mxu0 0.0
    %285 = vmatpush1.xpose.msra.mxu0 0.0
    %286 = vmatprep.subr.mxu0 0.0
    %287 = vmatpush1.xpose.msra.mxu0 0.0
    %288 = vmatprep.subr.mxu0 0.0
    %289 = vmatpush1.xpose.msra.mxu0 0.0
    %290 = vmatprep.subr.mxu0 0.0
    %291 = vmatpush1.xpose.msra.mxu0 0.0
    %292 = vmatprep.subr.mxu0 0.0
    %293 = vmatpush1.xpose.msra.mxu0 0.0
    %294 = vmatprep.subr.mxu0 0.0
    %295 = vmatpush1.xpose.msra.mxu0 0.0
    %296 = vmatprep.subr.mxu0 0.0
    %297 = vmatpush1.xpose.msra.mxu0 0.0
    %298 = vmatprep.subr.mxu0 0.0
    %299 = vmatpush1.xpose.msra.mxu0 0.0
    %300 = vmatprep.subr.mxu0 0.0
    %301 = vmatpush1.xpose.msra.mxu0 0.0
    %302 = vmatprep.subr.mxu0 0.0
    %303 = vmatpush1.xpose.msra.mxu0 0.0
    %304 = vmatprep.subr.mxu0 0.0
    %305 = vmatpush1.xpose.msra.mxu0 0.0
    %306 = vmatprep.subr.mxu0 0.0
    %307 = vmatpush1.xpose.msra.mxu0 0.0
    %308 = vmatprep.subr.mxu0 0.0
    %309 = vmatpush1.xpose.msra.mxu0 0.0
    %310 = vmatprep.subr.mxu0 0.0
    %311 = vmatpush1.xpose.msra.mxu0 0.0
    %312 = vmatprep.subr.mxu0 0.0
    %313 = vmatpush1.xpose.msra.mxu0 0.0
    %314 = vmatprep.subr.mxu0 0.0
    %315 = vmatpush1.xpose.msra.mxu0 0.0
    %316 = vmatprep.subr.mxu0 0.0
    %317 = vmatpush1.xpose.msra.mxu0 0.0
    %318 = vmatprep.subr.mxu0 0.0
    %319 = vmatpush1.xpose.msra.mxu0 0.0
    %320 = vmatprep.subr.mxu0 0.0
    %321 = vmatpush1.xpose.msra.mxu0 0.0
    %322 = vmatprep.subr.mxu0 0.0
    %323 = vmatpush1.xpose.msra.mxu0 0.0
    %324 = vmatprep.subr.mxu0 0.0
    %325 = vmatpush1.xpose.msra.mxu0 0.0
    %326 = vmatprep.subr.mxu0 0.0
    %327 = vmatpush1.xpose.msra.mxu0 0.0
    %328 = vmatprep.subr.mxu0 0.0
    %329 = vmatpush1.xpose.msra.mxu0 0.0
    %330 = vmatprep.subr.mxu0 0.0
    %331 = vmatpush1.xpose.msra.mxu0 0.0
    %332 = vmatprep.subr.mxu0 0.0
    %333 = vmatpush1.xpose.msra.mxu0 0.0
    %334 = vmatprep.subr.mxu0 0.0
    %335 = vmatpush1.xpose.msra.mxu0 0.0
    %336 = vmatprep.subr.mxu0 0.0
    %337 = vmatpush1.xpose.msra.mxu0 0.0
    %338 = vmatprep.subr.mxu0 0.0
    %339 = vmatpush1.xpose.msra.mxu0 0.0
    %340 = vmatprep.subr.mxu0 0.0
    %341 = vmatpush1.xpose.msra.mxu0 0.0
    %342 = vmatprep.mubr.f32.mxu0 0.0
    %343 = vmatmul.mubr.f32.gmra.mrb[0].mxu0 %v267
    %v344 = vpop.f32.mrb[0].mxu0
    %v345 = vadd.f32 %v277, %v344
    %v346 = vpop.f32.mrb[0].mxu0
    %347 = vdwg.mxu0
    %v348 = vsub.f32 0.0, %v345
    %v349 = vmul.f32 %v348, 1.442695
    %v350 = vpow.pop %v349
    %v351 = vadd.f32 %v350, 1.0
    %v352 = vrcp.pop %v351
    %vm353 = vcmask 122880
    %354 = vst.msk [vmem:[#allocation9] sm:$0x1] %vm353, %v352
    // Predicated region
    $region42: #{tpu_custom_call.1} parent=1 // pred_check
      _
    $region43: #{tpu_custom_call.1} parent=1 // pred_check_branch
      %356 = sbr.rel (0) target = $region45
    $region44: #{tpu_custom_call.1} parent=1 // pred_region
      %s358 = ssub.s32 16, 16
      %359 = vsyncadd [#allocation5], %s358
      %s361 = sshll.u32 [#allocation9], 4
      %s362 = int_to_ptr.vmem [resolvable:$true] %s361
      %364 = dma.vmem_to_hbm [thread:$0]  %s362, 16, %s7, [#allocation5]
    $region45: #{tpu_custom_call.1} parent=1 // pred_fallthru
      _
    // Predicated region
    $region46: #{tpu_custom_call.1} parent=1 // pred_check
      _
    $region47: #{tpu_custom_call.1} parent=1 // pred_check_branch
      %366 = sbr.rel (0) target = $region49
    $region48: #{tpu_custom_call.1} parent=1 // pred_region
      %367 = dma.done [#allocation5], 16
    $region49: #{tpu_custom_call.1} parent=1 // pred_fallthru
      _
    %368 = vsyncpa [#allocation4], 1
    %369 = vsyncpa [#allocation7], 1
    %370 = vsyncpa [#allocation5], 1

</llo_original>
